<compile_context>
chip_gen: v7x
topology: tpu7x:2x2x1
jax: 0.10.0
libtpu: 0.0.40
codegen_flags: <defaults>
</compile_context>

<pallas_src>
import jax
import jax.numpy as jnp
from jax.experimental import pallas as pl
from jax.experimental.pallas import tpu as pltpu


def linear_add_kernel(x_ref, wb_ref, y_ref, o_ref):
    # x_ref: (M, K), wb_ref: (K+1, N)  [rows 0:K = W^T, row K = bias],
    # y_ref: (M, N), o_ref: (M, N)
    K = x_ref.shape[1]
    w_t = wb_ref[:K, :]          # (K, N) static slice
    bias = wb_ref[K:, :]         # (1, N) static slice, broadcasts over rows
    acc = jnp.dot(x_ref[...], w_t, preferred_element_type=jnp.float32)
    o_ref[...] = (acc + bias + y_ref[...]).astype(o_ref.dtype)


def _model2_forward_impl(x, wb, y):
    """x: (M, K) f32, wb: (K+1, N) f32 (W^T stacked over bias), y: (M, N) f32.
    Returns (M, N) f32; y's buffer is donated/aliased to the output."""
    M, K = x.shape
    N = wb.shape[1]
    vmem = pl.BlockSpec(memory_space=pltpu.MemorySpace.VMEM)
    bytes_accessed = (M * K + (K + 1) * N + 2 * M * N) * 4  # f32 in + out traffic
    return pl.pallas_call(
        linear_add_kernel,
        out_shape=jax.ShapeDtypeStruct((M, N), x.dtype),
        in_specs=[vmem, vmem, vmem],
        out_specs=vmem,
        input_output_aliases={2: 0},  # y -> output (same shape/dtype, dead after add)
        cost_estimate=pl.CostEstimate(
            flops=2 * M * K * N,
            transcendentals=0,
            bytes_accessed=bytes_accessed,
        ),
    )(x, wb, y)


# donate_argnums=(2,) lets XLA actually honor the y -> output alias instead of
# inserting a defensive copy before the custom call.
model2_forward = jax.jit(_model2_forward_impl, donate_argnums=(2,))


if __name__ == "__main__":
    key = jax.random.PRNGKey(0)
    k_x, k_y, k_w, k_b = jax.random.split(key, 4)

    M, K, N = 32, 20, 30

    # Inputs (match torch.randn(32, 20), torch.randn(32, 30))
    x = jax.random.normal(k_x, (M, K), dtype=jnp.float32)
    y = jax.random.normal(k_y, (M, N), dtype=jnp.float32)

    # Deterministic Linear(20, 30) params, matching PyTorch's default init:
    # uniform(-1/sqrt(in_features), 1/sqrt(in_features))
    bound = 1.0 / jnp.sqrt(jnp.float32(K))
    w = jax.random.uniform(k_w, (N, K), dtype=jnp.float32, minval=-bound, maxval=bound)
    b = jax.random.uniform(k_b, (N,), dtype=jnp.float32, minval=-bound, maxval=bound)

    # One-time parameter prep: stack W^T (K, N) and bias (1, N) -> (K+1, N),
    # so the kernel needs a single DMA for both.
    wb = jnp.concatenate([w.T, b.reshape(1, N)], axis=0)

    # Compute reference BEFORE the kernel call: y's buffer is donated to the
    # kernel output and must not be read afterwards.
    ref = x @ w.T + b + y
    ref = jax.block_until_ready(ref)

    out = model2_forward(x, wb, y)
    out = jax.block_until_ready(out)

    assert out.shape == (M, N)
    assert jnp.allclose(out, ref, atol=1e-5, rtol=1e-5)

    print("KERNEL_OK")
</pallas_src>

<mosaic_0001>
module attributes {stable_mosaic.version = 11 : i64} {
  func.func @linear_add_kernel(%arg0: memref<32x20xf32, #tpu.memory_space<vmem>>, %arg1: memref<21x30xf32, #tpu.memory_space<vmem>>, %arg2: memref<32x30xf32, #tpu.memory_space<vmem>>, %arg3: memref<32x30xf32, #tpu.memory_space<vmem>>) attributes {dimension_semantics = [], scalar_prefetch = 0 : i64, scratch_operands = 0 : i64, tpu.core_type = #tpu.core_type<tc>} {
    %c0 = arith.constant 0 : index
    %c0_0 = arith.constant 0 : index
    %0 = vector.load %arg1[%c0, %c0_0] : memref<21x30xf32, #tpu.memory_space<vmem>>, vector<20x30xf32>
    %c20 = arith.constant 20 : index
    %c0_1 = arith.constant 0 : index
    %1 = vector.load %arg1[%c20, %c0_1] : memref<21x30xf32, #tpu.memory_space<vmem>>, vector<1x30xf32>
    %c0_2 = arith.constant 0 : index
    %c0_3 = arith.constant 0 : index
    %2 = vector.load %arg0[%c0_2, %c0_3] : memref<32x20xf32, #tpu.memory_space<vmem>>, vector<32x20xf32>
    %cst = arith.constant dense<0.000000e+00> : vector<32x30xf32>
    %3 = tpu.matmul %2, %0, %cst {dimension_numbers = #tpu.dot_dimension_numbers<[1], [0], [0], [1], [0, 0, 1, 1], [], []>} : vector<32x20xf32>, vector<20x30xf32>, vector<32x30xf32> -> vector<32x30xf32>
    %4 = vector.broadcast %1 : vector<1x30xf32> to vector<32x30xf32>
    %5 = arith.addf %3, %4 : vector<32x30xf32>
    %c0_4 = arith.constant 0 : index
    %c0_5 = arith.constant 0 : index
    %6 = vector.load %arg2[%c0_4, %c0_5] : memref<32x30xf32, #tpu.memory_space<vmem>>, vector<32x30xf32>
    %7 = arith.addf %5, %6 : vector<32x30xf32>
    %c0_6 = arith.constant 0 : index
    %c0_7 = arith.constant 0 : index
    %8 = vector.load %arg3[%c0_6, %c0_7] : memref<32x30xf32, #tpu.memory_space<vmem>>, vector<32x30xf32>
    tpu.vector_store %arg3[%c0_6, %c0_7], %7 {strides = array<i32>} : memref<32x30xf32, #tpu.memory_space<vmem>>, vector<32x30xf32>,
    return
  }
}

</mosaic_0001>

<llo_original>
// kernel: _model2_forward_impl.1
$region0: #{_model2_forward_impl.1}
  #allocation0 [shape = 'u32[]', space=smem, size = 0x4, offset = 0x4, fixed_abs, tag = 'smem constant byte address 0x4 - core index']
  #allocation1 [shape = 'u32[144,128]{1,0:T(1,128)}', space=vmem, size = 0x12000, scoped, tag = 'internal scratch']
  %s0 = inlined_call_operand.vmem [shape: f32[32,20], index: 0, kind: input, shape index: {}]
  %s1 = inlined_call_operand.vmem [shape: f32[21,30], index: 1, kind: input, shape index: {}]
  %s2 = inlined_call_operand.hbm [shape: f32[32,30], index: 2, kind: input, shape index: {}, may-alias: {2,3}]
  %s3 = inlined_call_operand.hbm [shape: f32[32,30], index: 3, kind: output, shape index: {}, may-alias: {2,3}]
  %s4 = sld [smem:[#allocation0]]
  $region26: #{_model2_forward_impl.1} parent=0
    _
  %s6 = ssub.s32 1, %s4
  %s7 = scalar_select 0, %s6, %s4
  $region1: #{_model2_forward_impl.1} parent=0
    #allocation2 [shape = 'u8[16384]{0}', space=vmem, size = 0x4000, scoped, tag = 'input window, operand 2, single buffered']
    #allocation3 [shape = 's32[1]{0}', space=sflag, size = 0x4, scoped, tag = 'scoped memory for _model2_forward_impl.1']
    #allocation4 [shape = 's32[1]{0}', space=sflag, size = 0x4, scoped, tag = 'scoped memory for _model2_forward_impl.1']
    #allocation5 [shape = 'u8[16384]{0}', space=vmem, size = 0x4000, scoped, tag = 'output window, operand 0, single buffered']
    %8 = vsyncpa [#allocation3], 0
    %9 = vsyncpa [#allocation4], 0
    // Predicated region
    $region2: #{_model2_forward_impl.1} parent=1 // pred_check
      _
    $region3: #{_model2_forward_impl.1} parent=1 // pred_check_branch
      %11 = sbr.rel (0) target = $region5
    $region4: #{_model2_forward_impl.1} parent=1 // pred_region
      _
    $region5: #{_model2_forward_impl.1} parent=1 // pred_fallthru
      _
    // Predicated region
    $region6: #{_model2_forward_impl.1} parent=1 // pred_check
      _
    $region7: #{_model2_forward_impl.1} parent=1 // pred_check_branch
      %13 = sbr.rel (0) target = $region9
    $region8: #{_model2_forward_impl.1} parent=1 // pred_region
      _
    $region9: #{_model2_forward_impl.1} parent=1 // pred_fallthru
      _
    // Predicated region
    $region10: #{_model2_forward_impl.1} parent=1 // pred_check
      _
    $region11: #{_model2_forward_impl.1} parent=1 // pred_check_branch
      %15 = sbr.rel (0) target = $region13
    $region12: #{_model2_forward_impl.1} parent=1 // pred_region
      %s17 = ssub.s32 512, 512
      %18 = vsyncadd [#allocation3], %s17
      %s19 = sshll.u32 [#allocation2], 4
      %s20 = int_to_ptr.vmem [resolvable:$true] %s19
      %25 = dma.hbm_to_vmem [thread:$0]  %s2, 512, %s20, [#allocation3], 128, 128, 8
    $region13: #{_model2_forward_impl.1} parent=1 // pred_fallthru
      _
    // Predicated region
    $region14: #{_model2_forward_impl.1} parent=1 // pred_check
      _
    $region15: #{_model2_forward_impl.1} parent=1 // pred_check_branch
      %27 = sbr.rel (0) target = $region17
    $region16: #{_model2_forward_impl.1} parent=1 // pred_region
      %28 = dma.done [#allocation3], 512
    $region17: #{_model2_forward_impl.1} parent=1 // pred_fallthru
      _
    %v29 = vld [vmem:[%s1] sm:$0xff]
    %v30 = vld [vmem:[%s1 + $0x8] sm:$0xff]
    %v31 = vld [vmem:[%s1 + $0x10] sm:$0xf]
    %v32 = vld [vmem:[%s1 + $0x14] sm:$0x1]
    %v33 = vld [vmem:[%s0] sm:$0xff]
    %v34 = vld [vmem:[%s0 + $0x8] sm:$0xff]
    %v35 = vld [vmem:[%s0 + $0x10] sm:$0xff]
    %v36 = vld [vmem:[%s0 + $0x18] sm:$0xff]
    %v37 = vlaneseq
    %v38 = vshrl.u32 %v37, 7
    %v39 = vsub.s32 0, %v38
    %v40 = vrot.slane %v32, %v39
    %vm41 = vcmask 162816
    %v43 = vsel %vm41, %v33, 0
    %v46 = vsel %vm41, %v34, 0
    %v49 = vsel %vm41, %v35, 0
    %v52 = vsel %vm41, %v36, 0
    %vm54 = vcmask 1043456
    %v56 = vsel %vm54, %v31, 0
    %58 = vmatprep.subr.mxu0 0.0
    %59 = vmatpush1.msra.mxu0 %v29
    %60 = vmatprep.subr.mxu0 0.0
    %61 = vmatpush1.msra.mxu0 %v30
    %62 = vmatprep.subr.mxu0 0.0
    %63 = vmatpush1.msra.mxu0 %v56
    %64 = vmatprep.subr.mxu0 0.0
    %65 = vmatpush1.msra.mxu0 0.0
    %66 = vmatprep.subr.mxu0 0.0
    %67 = vmatpush1.msra.mxu0 0.0
    %68 = vmatprep.subr.mxu0 0.0
    %69 = vmatpush1.msra.mxu0 0.0
    %70 = vmatprep.subr.mxu0 0.0
    %71 = vmatpush1.msra.mxu0 0.0
    %72 = vmatprep.subr.mxu0 0.0
    %73 = vmatpush1.msra.mxu0 0.0
    %74 = vmatprep.subr.mxu0 0.0
    %75 = vmatpush1.msra.mxu0 0.0
    %76 = vmatprep.subr.mxu0 0.0
    %77 = vmatpush1.msra.mxu0 0.0
    %78 = vmatprep.subr.mxu0 0.0
    %79 = vmatpush1.msra.mxu0 0.0
    %80 = vmatprep.subr.mxu0 0.0
    %81 = vmatpush1.msra.mxu0 0.0
    %82 = vmatprep.subr.mxu0 0.0
    %83 = vmatpush1.msra.mxu0 0.0
    %84 = vmatprep.subr.mxu0 0.0
    %85 = vmatpush1.msra.mxu0 0.0
    %86 = vmatprep.subr.mxu0 0.0
    %87 = vmatpush1.msra.mxu0 0.0
    %88 = vmatprep.subr.mxu0 0.0
    %89 = vmatpush1.msra.mxu0 0.0
    %90 = vmatprep.subr.mxu0 0.0
    %91 = vmatpush1.msra.mxu0 0.0
    %92 = vmatprep.subr.mxu0 0.0
    %93 = vmatpush1.msra.mxu0 0.0
    %94 = vmatprep.subr.mxu0 0.0
    %95 = vmatpush1.msra.mxu0 0.0
    %96 = vmatprep.subr.mxu0 0.0
    %97 = vmatpush1.msra.mxu0 0.0
    %98 = vmatprep.subr.mxu0 0.0
    %99 = vmatpush1.msra.mxu0 0.0
    %100 = vmatprep.subr.mxu0 0.0
    %101 = vmatpush1.msra.mxu0 0.0
    %102 = vmatprep.subr.mxu0 0.0
    %103 = vmatpush1.msra.mxu0 0.0
    %104 = vmatprep.subr.mxu0 0.0
    %105 = vmatpush1.msra.mxu0 0.0
    %106 = vmatprep.subr.mxu0 0.0
    %107 = vmatpush1.msra.mxu0 0.0
    %108 = vmatprep.subr.mxu0 0.0
    %109 = vmatpush1.msra.mxu0 0.0
    %110 = vmatprep.subr.mxu0 0.0
    %111 = vmatpush1.msra.mxu0 0.0
    %112 = vmatprep.subr.mxu0 0.0
    %113 = vmatpush1.msra.mxu0 0.0
    %114 = vmatprep.subr.mxu0 0.0
    %115 = vmatpush1.msra.mxu0 0.0
    %116 = vmatprep.subr.mxu0 0.0
    %117 = vmatpush1.msra.mxu0 0.0
    %118 = vmatprep.subr.mxu0 0.0
    %119 = vmatpush1.msra.mxu0 0.0
    %120 = vmatprep.subr.mxu0 0.0
    %121 = vmatpush1.msra.mxu0 0.0
    %122 = vmatprep.mubr.f32.mxu0 0.0
    %123 = vmatmul.mubr.f32.gmra.mrb[0].mxu0 %v43
    %v124 = vpop.f32.mrb[0].mxu0
    %v125 = vadd.f32 %v40, %v124
    %v126 = vpop.f32.mrb[0].mxu0
    %127 = vmatprep.mubr.f32.mxu0 0.0
    %128 = vmatmul.mubr.f32.gmra.mrb[0].mxu0 %v46
    %v129 = vpop.f32.mrb[0].mxu0
    %v130 = vadd.f32 %v40, %v129
    %v131 = vpop.f32.mrb[0].mxu0
    %132 = vmatprep.mubr.f32.mxu0 0.0
    %133 = vmatmul.mubr.f32.gmra.mrb[0].mxu0 %v49
    %v134 = vpop.f32.mrb[0].mxu0
    %v135 = vadd.f32 %v40, %v134
    %v136 = vpop.f32.mrb[0].mxu0
    %137 = vmatprep.mubr.f32.mxu0 0.0
    %138 = vmatmul.mubr.f32.gmra.mrb[0].mxu0 %v52
    %v139 = vpop.f32.mrb[0].mxu0
    %v140 = vadd.f32 %v40, %v139
    %v141 = vpop.f32.mrb[0].mxu0
    %142 = vdwg.mxu0
    %v143 = vld [vmem:[#allocation2] sm:$0xff]
    %v144 = vld [vmem:[#allocation2 + $0x8] sm:$0xff]
    %v145 = vld [vmem:[#allocation2 + $0x10] sm:$0xff]
    %v146 = vld [vmem:[#allocation2 + $0x18] sm:$0xff]
    %v147 = vadd.f32 %v125, %v143
    %v148 = vadd.f32 %v130, %v144
    %v149 = vadd.f32 %v135, %v145
    %v150 = vadd.f32 %v140, %v146
    %vm151 = vcmask 244736
    %152 = vst.msk [vmem:[#allocation5] sm:$0xff] %vm151, %v147
    %153 = vst.msk [vmem:[#allocation5 + $0x8] sm:$0xff] %vm151, %v148
    %154 = vst.msk [vmem:[#allocation5 + $0x10] sm:$0xff] %vm151, %v149
    %155 = vst.msk [vmem:[#allocation5 + $0x18] sm:$0xff] %vm151, %v150
    // Predicated region
    $region18: #{_model2_forward_impl.1} parent=1 // pred_check
      _
    $region19: #{_model2_forward_impl.1} parent=1 // pred_check_branch
      %157 = sbr.rel (0) target = $region21
    $region20: #{_model2_forward_impl.1} parent=1 // pred_region
      %s159 = ssub.s32 512, 512
      %160 = vsyncadd [#allocation4], %s159
      %s161 = sshll.u32 [#allocation5], 4
      %s162 = int_to_ptr.vmem [resolvable:$true] %s161
      %167 = dma.vmem_to_hbm [thread:$0]  %s162, 512, %s3, [#allocation4], 128, 128, 8
    $region21: #{_model2_forward_impl.1} parent=1 // pred_fallthru
      _
    // Predicated region
    $region22: #{_model2_forward_impl.1} parent=1 // pred_check
      _
    $region23: #{_model2_forward_impl.1} parent=1 // pred_check_branch
      %169 = sbr.rel (0) target = $region25
    $region24: #{_model2_forward_impl.1} parent=1 // pred_region
      %170 = dma.done [#allocation4], 512
    $region25: #{_model2_forward_impl.1} parent=1 // pred_fallthru
      _
    %171 = vsyncpa [#allocation3], 1
    %172 = vsyncpa [#allocation4], 1

</llo_original>
